<compile_context>
chip_gen: v7x
topology: tpu7x:2x2x1
jax: 0.10.0
libtpu: 0.0.40
codegen_flags: <defaults>
</compile_context>

<pallas_src>
import jax
import jax.numpy as jnp
from jax import lax
from jax.experimental import pallas as pl
from jax.experimental.pallas import tpu as pltpu  # noqa: F401  (TPU backend)

M = 256
N = 19
DEFAULT_T = 0.07  # temperature from uniform_loss.__init__(t=0.07)


def _make_uniform_loss_kernel(inv_t: float, n_rows: int):
    """Build the kernel with 1/t and N baked in as compile-time constants."""
    inv_t = float(inv_t)
    inv_n = 1.0 / float(n_rows)

    def kernel(x_ref, o_ref):
        # x_ref : (N, M) f32 in VMEM
        # o_ref : (1, 1) f32 in VMEM (scalar output block)
        x = x_ref[...].astype(jnp.bfloat16)  # native MXU operand dtype

        # Gram matrix on the MXU: contract dim 1 of x with dim 1 of x
        # (== x @ x.T) without materializing a transposed operand.
        g = lax.dot_general(
            x, x,
            dimension_numbers=(((1,), (1,)), ((), ())),
            preferred_element_type=jnp.float32,
        ) * inv_t                                                   # (N, N) f32

        # Numerically-stable logsumexp per row (same math as exp->sum->log).
        row_max = jnp.max(g, axis=-1, keepdims=True)                 # (N, 1)
        lse = row_max + jnp.log(
            jnp.sum(jnp.exp(g - row_max), axis=-1, keepdims=True))   # (N, 1)

        # mean over rows, kept 2-D so the store is a plain (1,1) block write.
        o_ref[...] = jnp.sum(lse, axis=0, keepdims=True) * inv_n     # (1, 1)

    return kernel


def uniform_loss(x: jax.Array, t: float = DEFAULT_T) -> jax.Array:
    assert x.ndim == 2
    n, m = x.shape
    kernel = _make_uniform_loss_kernel(1.0 / t, n)

    out = pl.pallas_call(
        kernel,
        out_shape=jax.ShapeDtypeStruct((1, 1), jnp.float32),
        in_specs=[pl.BlockSpec((n, m), lambda: (0, 0))],   # full block in VMEM
        out_specs=pl.BlockSpec((1, 1), lambda: (0, 0)),
        cost_estimate=pl.CostEstimate(
            flops=2 * n * n * m,
            transcendentals=n * n + n,                     # exp + log
            bytes_accessed=x.size * x.dtype.itemsize + 4,
        ),
    )(x)
    return out[0, 0]


def _uniform_loss_ref(x: jax.Array, t: float = DEFAULT_T) -> jax.Array:
    # Literal PyTorch formula (exp -> sum -> log), HIGHEST precision matmul
    # so the comparison isn't dominated by matmul truncation in the reference.
    g = jnp.matmul(x, x.T, precision=lax.Precision.HIGHEST) / t
    return jnp.mean(jnp.log(jnp.sum(jnp.exp(g), axis=-1)))


if __name__ == "__main__":
    key = jax.random.PRNGKey(0)
    x = jax.random.normal(key, (N, M), dtype=jnp.float32)
    # L2-normalize rows (uniform_loss operates on hypersphere embeddings);
    # this also keeps the naive exp->sum->log reference finite for comparison.
    x = x / jnp.linalg.norm(x, axis=-1, keepdims=True)

    out = uniform_loss(x)
    jax.block_until_ready(out)

    ref = _uniform_loss_ref(x)
    # Tolerance accounts for the in-kernel bf16 MXU operands vs the f32
    # HIGHEST-precision reference, amplified through exp/log (output ~14.3).
    assert jnp.allclose(out, ref, rtol=5e-3, atol=5e-3), (out, ref)

    print("KERNEL_OK")
</pallas_src>

<mosaic_0001>
module attributes {stable_mosaic.version = 11 : i64} {
  func.func @kernel(%arg0: memref<19x256xf32, #tpu.memory_space<vmem>>, %arg1: memref<1x1xf32, #tpu.memory_space<vmem>>) attributes {dimension_semantics = [], scalar_prefetch = 0 : i64, scratch_operands = 0 : i64, tpu.core_type = #tpu.core_type<tc>} {
    %c0 = arith.constant 0 : index
    %c0_0 = arith.constant 0 : index
    %0 = vector.load %arg0[%c0, %c0_0] : memref<19x256xf32, #tpu.memory_space<vmem>>, vector<19x256xf32>
    %1 = arith.truncf %0 : vector<19x256xf32> to vector<19x256xbf16>
    %cst = arith.constant dense<0.000000e+00> : vector<19x19xf32>
    %2 = tpu.matmul %1, %1, %cst {dimension_numbers = #tpu.dot_dimension_numbers<[1], [1], [0], [0], [0, 0, 1, 0], [], []>} : vector<19x256xbf16>, vector<19x256xbf16>, vector<19x19xf32> -> vector<19x19xf32>
    %cst_1 = arith.constant 14.2857141 : f32
    %3 = vector.broadcast %cst_1 : f32 to vector<19x19xf32>
    %4 = arith.mulf %2, %3 : vector<19x19xf32>
    %cst_2 = arith.constant dense<0xFF800000> : vector<19xf32>
    %5 = vector.multi_reduction <maximumf>, %4, %cst_2 [1] : vector<19x19xf32> to vector<19xf32>
    %6 = vector.shape_cast %5 : vector<19xf32> to vector<19x1xf32>
    %7 = vector.broadcast %6 : vector<19x1xf32> to vector<19x19xf32>
    %8 = arith.subf %4, %7 : vector<19x19xf32>
    %9 = math.exp %8 : vector<19x19xf32>
    %cst_3 = arith.constant dense<0.000000e+00> : vector<19xf32>
    %10 = vector.multi_reduction <add>, %9, %cst_3 [1] : vector<19x19xf32> to vector<19xf32>
    %11 = vector.shape_cast %10 : vector<19xf32> to vector<19x1xf32>
    %12 = math.log %11 : vector<19x1xf32>
    %13 = arith.addf %6, %12 : vector<19x1xf32>
    %cst_4 = arith.constant dense<0.000000e+00> : vector<1xf32>
    %14 = vector.multi_reduction <add>, %13, %cst_4 [0] : vector<19x1xf32> to vector<1xf32>
    %15 = vector.shape_cast %14 : vector<1xf32> to vector<1x1xf32>
    %cst_5 = arith.constant 0.0526315793 : f32
    %16 = vector.broadcast %cst_5 : f32 to vector<1x1xf32>
    %17 = arith.mulf %15, %16 : vector<1x1xf32>
    %c0_6 = arith.constant 0 : index
    %c0_7 = arith.constant 0 : index
    %18 = vector.load %arg1[%c0_6, %c0_7] : memref<1x1xf32, #tpu.memory_space<vmem>>, vector<1x1xf32>
    tpu.vector_store %arg1[%c0_6, %c0_7], %17 {strides = array<i32>} : memref<1x1xf32, #tpu.memory_space<vmem>>, vector<1x1xf32>,
    return
  }
}

</mosaic_0001>

<llo_original>
// kernel: tpu_custom_call.1
$region0: #{tpu_custom_call.1}
  #allocation0 [shape = 'u32[]', space=smem, size = 0x4, offset = 0x4, fixed_abs, tag = 'smem constant byte address 0x4 - core index']
  #allocation1 [shape = 'u32[144,128]{1,0:T(1,128)}', space=vmem, size = 0x12000, scoped, tag = 'internal scratch']
  %s0 = inlined_call_operand.hbm [shape: f32[19,256], index: 0, kind: input, shape index: {}]
  %s1 = inlined_call_operand.hbm [shape: f32[1,1], index: 1, kind: output, shape index: {}]
  %s2 = sld [smem:[#allocation0]]
  $region18: #{tpu_custom_call.1} parent=0
    _
  %s4 = ssub.s32 1, %s2
  %s5 = scalar_select 0, %s4, %s2
  $region1: #{tpu_custom_call.1} parent=0
    #allocation2 [shape = 'u8[24576]{0}', space=vmem, size = 0x6000, scoped, tag = 'input window, operand 0, single buffered']
    #allocation3 [shape = 's32[1]{0}', space=sflag, size = 0x4, scoped, tag = 'scoped memory for tpu_custom_call.1']
    #allocation4 [shape = 's32[1]{0}', space=sflag, size = 0x4, scoped, tag = 'scoped memory for tpu_custom_call.1']
    #allocation5 [shape = 'u8[512]{0}', space=vmem, size = 0x400, scoped, tag = 'output window, operand 0, single buffered']
    %6 = vsyncpa [#allocation3], 0
    %7 = vsyncpa [#allocation4], 0
    // Predicated region
    $region2: #{tpu_custom_call.1} parent=1 // pred_check
      _
    $region3: #{tpu_custom_call.1} parent=1 // pred_check_branch
      %9 = sbr.rel (0) target = $region5
    $region4: #{tpu_custom_call.1} parent=1 // pred_region
      %s11 = ssub.s32 768, 768
      %12 = vsyncadd [#allocation3], %s11
      %s13 = sshll.u32 [#allocation2], 4
      %s14 = int_to_ptr.vmem [resolvable:$true] %s13
      %19 = dma.hbm_to_vmem [thread:$0]  %s0, 768, %s14, [#allocation3], 256, 256, 16
    $region5: #{tpu_custom_call.1} parent=1 // pred_fallthru
      _
    // Predicated region
    $region6: #{tpu_custom_call.1} parent=1 // pred_check
      _
    $region7: #{tpu_custom_call.1} parent=1 // pred_check_branch
      %21 = sbr.rel (0) target = $region9
    $region8: #{tpu_custom_call.1} parent=1 // pred_region
      %22 = dma.done [#allocation3], 768
    $region9: #{tpu_custom_call.1} parent=1 // pred_fallthru
      _
    %v24 = vld [vmem:[#allocation2] sm:$0xff]
    %v25 = vld [vmem:[#allocation2 + $0x8] sm:$0xff]
    %v26 = vld [vmem:[#allocation2 + $0x10] sm:$0xff]
    %v27 = vld [vmem:[#allocation2 + $0x18] sm:$0xff]
    %v28 = vld [vmem:[#allocation2 + $0x20] sm:$0x7]
    %v29 = vld [vmem:[#allocation2 + $0x28] sm:$0x7]
    %v30 = vpack.c.bf16 %v26, %v24
    %v31 = vpack.c.bf16 %v27, %v25
    %v32 = vpack.c.bf16 %v28, %v28
    %v33 = vpack.c.bf16 %v29, %v29
    %34 = vmatprep.subr.bf16.mxu0 %v31
    %35 = vmatpush1.bf16.xpose.msra.mxu0 %v30
    %36 = vmatprep.subr.bf16.mxu0 %v33
    %37 = vmatpush1.bf16.xpose.msra.mxu0 %v32
    %38 = vmatprep.subr.bf16.mxu0 0
    %39 = vmatpush1.bf16.xpose.msra.mxu0 0
    %40 = vmatprep.subr.bf16.mxu0 0
    %41 = vmatpush1.bf16.xpose.msra.mxu0 0
    %42 = vmatprep.subr.bf16.mxu0 0
    %43 = vmatpush1.bf16.xpose.msra.mxu0 0
    %44 = vmatprep.subr.bf16.mxu0 0
    %45 = vmatpush1.bf16.xpose.msra.mxu0 0
    %46 = vmatprep.subr.bf16.mxu0 0
    %47 = vmatpush1.bf16.xpose.msra.mxu0 0
    %48 = vmatprep.subr.bf16.mxu0 0
    %49 = vmatpush1.bf16.xpose.msra.mxu0 0
    %50 = vmatprep.subr.bf16.mxu0 0
    %51 = vmatpush1.bf16.xpose.msra.mxu0 0
    %52 = vmatprep.subr.bf16.mxu0 0
    %53 = vmatpush1.bf16.xpose.msra.mxu0 0
    %54 = vmatprep.subr.bf16.mxu0 0
    %55 = vmatpush1.bf16.xpose.msra.mxu0 0
    %56 = vmatprep.subr.bf16.mxu0 0
    %57 = vmatpush1.bf16.xpose.msra.mxu0 0
    %58 = vmatprep.subr.bf16.mxu0 0
    %59 = vmatpush1.bf16.xpose.msra.mxu0 0
    %60 = vmatprep.subr.bf16.mxu0 0
    %61 = vmatpush1.bf16.xpose.msra.mxu0 0
    %62 = vmatprep.subr.bf16.mxu0 0
    %63 = vmatpush1.bf16.xpose.msra.mxu0 0
    %64 = vmatprep.subr.bf16.mxu0 0
    %65 = vmatpush1.bf16.xpose.msra.mxu0 0
    %66 = vmatprep.mubr.bf16.mxu0 %v31
    %67 = vmatmul.mubr.bf16.gmra.mrb[0].mxu0 %v30
    %v68 = vpop.f32.mrb[0].mxu0
    %v69 = vadd.f32 0.0, %v68
    %v70 = vpop.f32.mrb[0].mxu0
    %v71 = vpop.f32.mrb[0].mxu0
    %v72 = vadd.f32 0.0, %v71
    %v73 = vpop.f32.mrb[0].mxu0
    %74 = vmatprep.mubr.bf16.mxu0 %v33
    %75 = vmatmul.mubr.bf16.gmra.mrb[0].mxu0 %v32
    %v76 = vpop.f32.mrb[0].mxu0
    %v77 = vadd.f32 0.0, %v76
    %v78 = vpop.f32.mrb[0].mxu0
    %v79 = vpop.f32.mrb[0].mxu0
    %v80 = vpop.f32.mrb[0].mxu0
    %81 = vdwg.mxu0
    %v82 = vmul.f32 %v69, 14.285714
    %v83 = vmul.f32 %v72, 14.285714
    %v84 = vmul.f32 %v77, 14.285714
    %vm85 = vcmask 154624
    %v86 = vsel %vm85, %v82, -inf
    %87 = vmax.xlane.f32.xlu0 %v86
    %v88 = vpop.xlane.xlu0 %87
    %v89 = vsel %vm85, %v83, -inf
    %90 = vmax.xlane.f32.xlu0 %v89
    %v91 = vpop.xlane.xlu0 %90
    %vm92 = vcmask 149504
    %v93 = vsel %vm92, %v84, -inf
    %94 = vmax.xlane.f32.xlu0 %v93
    %v95 = vpop.xlane.xlu0 %94
    %v96 = vsub.f32 %v82, %v88
    %v97 = vsub.f32 %v83, %v91
    %v98 = vsub.f32 %v84, %v95
    %v99 = vmul.f32 %v96, 1.442695
    %v100 = vpow.pop %v99
    %v101 = vmul.f32 %v97, 1.442695
    %v102 = vpow.pop %v101
    %v103 = vmul.f32 %v98, 1.442695
    %v104 = vpow.pop %v103
    %v105 = vsel %vm85, %v100, 0.0
    %106 = vadd.xlane.f32.xlu0 %v105
    %v107 = vpop.xlane.xlu0 %106
    %v108 = vsel %vm85, %v102, 0.0
    %109 = vadd.xlane.f32.xlu0 %v108
    %v110 = vpop.xlane.xlu0 %109
    %v111 = vsel %vm92, %v104, 0.0
    %112 = vadd.xlane.f32.xlu0 %v111
    %v113 = vpop.xlane.xlu0 %112
    %v114 = vlog2.pop %v107
    %v115 = vmul.f32 %v114, 0.6931472
    %v116 = vlog2.pop %v110
    %v117 = vmul.f32 %v116, 0.6931472
    %v118 = vlog2.pop %v113
    %v119 = vmul.f32 %v118, 0.6931472
    %v120 = vadd.f32 %v88, %v115
    %v121 = vadd.f32 %v91, %v117
    %v122 = vadd.f32 %v95, %v119
    %v123 = vadd.f32 %v120, %v121
    %vm124 = vcmask 1042432
    %v125 = vsel %vm124, %v122, 0.0
    %v126 = vadd.f32 %v123, %v125
    %v127 = vrot.slane %v126, 4
    %v128 = vadd.f32 %v126, %v127
    %v129 = vrot.slane %v128, 2
    %v130 = vadd.f32 %v128, %v129
    %v131 = vrot.slane %v130, 1
    %v132 = vadd.f32 %v130, %v131
    %v133 = vmul.f32 %v132, 0.05263158
    %vm134 = vcmask 0
    %135 = vst.msk [vmem:[#allocation5] sm:$0x1] %vm134, %v133
    // Predicated region
    $region10: #{tpu_custom_call.1} parent=1 // pred_check
      _
    $region11: #{tpu_custom_call.1} parent=1 // pred_check_branch
      %137 = sbr.rel (0) target = $region13
    $region12: #{tpu_custom_call.1} parent=1 // pred_region
      %s139 = ssub.s32 16, 16
      %140 = vsyncadd [#allocation4], %s139
      %s142 = sshll.u32 [#allocation5], 4
      %s143 = int_to_ptr.vmem [resolvable:$true] %s142
      %145 = dma.vmem_to_hbm [thread:$0]  %s143, 16, %s1, [#allocation4]
    $region13: #{tpu_custom_call.1} parent=1 // pred_fallthru
      _
    // Predicated region
    $region14: #{tpu_custom_call.1} parent=1 // pred_check
      _
    $region15: #{tpu_custom_call.1} parent=1 // pred_check_branch
      %147 = sbr.rel (0) target = $region17
    $region16: #{tpu_custom_call.1} parent=1 // pred_region
      %148 = dma.done [#allocation4], 16
    $region17: #{tpu_custom_call.1} parent=1 // pred_fallthru
      _
    %149 = vsyncpa [#allocation3], 1
    %150 = vsyncpa [#allocation4], 1

</llo_original>
